<compile_context>
chip_gen: v7x
topology: tpu7x:2x2x1
jax: 0.10.0
libtpu: 0.0.40
codegen_flags: <defaults>
</compile_context>

<pallas_src>
import math

import jax
import jax.numpy as jnp
from jax import lax
from jax.experimental import pallas as pl
from jax.experimental.pallas import tpu as pltpu


def _lora_linear_kernel(x_ref, w_ref, b_ref, xa_ref, bsc_ref, o_ref, acc_ref):
    """Grid point (i, j, k):
         k==0     : acc[i,j]  = bias[j]            (bias folded into init)
         every k  : acc[i,j] += x[i,k] @ W[j,k]^T
         k==last  : out[i,j]  = acc + xa[i] @ (scaling*B)[j]^T
       xa = x @ A^T is precomputed wrapper-side (depends only on (i,k))."""
    k = pl.program_id(2)

    @pl.when(k == 0)
    def _init():
        acc_ref[...] = jnp.broadcast_to(
            b_ref[...].astype(jnp.float32), acc_ref.shape)

    # Pretrained path: x @ W^T   (W tile is (tn, tk); contract trailing dims).
    acc_ref[...] += lax.dot_general(
        x_ref[...], w_ref[...], (((1,), (1,)), ((), ())),
        preferred_element_type=jnp.float32)

    @pl.when(k == pl.num_programs(2) - 1)
    def _finalize():
        # LoRA stage 2 (rank-r): xa @ (scaling*B)^T   (B tile is (tn, r)).
        lora = lax.dot_general(
            xa_ref[...], bsc_ref[...], (((1,), (1,)), ((), ())),
            preferred_element_type=jnp.float32)
        o_ref[...] = (acc_ref[...] + lora).astype(o_ref.dtype)


def _pick_feature_tile(dim, want):
    """Lane-axis tile: largest 256- (preferred, v6e/v7x MXU) or 128-multiple
    divisor of `dim` that is <= `want`; else the full extent."""
    if dim <= want or dim % 128 != 0:
        return dim
    for align in (256, 128):
        if dim % align != 0 or want < align:
            continue
        t = (want // align) * align
        while t >= align:
            if dim % t == 0:
                return t
            t -= align
    return dim


def lora_linear(x, weight, bias, lora_A, lora_B, *, lora_alpha, r,
                tm=256, tn=None, tk=None, operand_dtype=None,
                buffer_depth=None):
    """LoRALinear forward.

    x: (..., in_f); weight: (out_f, in_f); bias: (out_f,);
    lora_A: (r, in_f); lora_B: (out_f, r).
    operand_dtype: optionally cast x/W MXU streams (e.g. jnp.bfloat16 on v5e/v6e).
    buffer_depth: optionally deepen pipelining of the x/W streams (pl.Buffered).
    """
    out_f, in_f = weight.shape
    scaling = lora_alpha / r

    x2 = x.reshape(-1, in_f)                                  # (M, in_f)
    M = x2.shape[0]
    out_dtype = x.dtype

    # --- chip-derived VMEM budget & tile wants ------------------------------
    try:
        vmem_cap = int(getattr(pltpu.get_tpu_info(), "vmem_capacity_bytes",
                               64 * 1024 * 1024))
    except Exception:
        vmem_cap = 64 * 1024 * 1024                            # conservative (v7x)
    big_vmem = vmem_cap >= 100 * 1024 * 1024                   # v5e / v6e (128 MiB)
    if tk is None:
        tk = 2048 if big_vmem else 1024                        # reduction tile
    if tn is None:
        tn = 1024                                              # out-feature tile

    # --- LoRA stage-1 hoist (wrapper-side): xa = x @ A^T, tiny (M, r) f32 ----
    # TODO(synk): lora_dropout > 0 would apply a dropout mask to x here; p=0 -> identity.
    xa = lax.dot_general(x2, lora_A, (((1,), (1,)), ((), ())),
                         preferred_element_type=jnp.float32)   # (M, r) f32

    # Optional bf16 (or fp8) cast of the two big MXU streams.
    if operand_dtype is not None:
        x2 = x2.astype(operand_dtype)
        weight = weight.astype(operand_dtype)
    op_isz = jnp.dtype(x2.dtype).itemsize

    # --- tile selection ------------------------------------------------------
    tk = _pick_feature_tile(in_f, tk)                          # K (reduction, last)
    tn = _pick_feature_tile(out_f, tn)                         # N (output lanes)
    sub = {4: 8, 2: 16, 1: 32}.get(op_isz, 8)                  # sublane packing
    tm = max(sub, min(tm, ((M + sub - 1) // sub) * sub))
    tm = ((tm + sub - 1) // sub) * sub                         # rows, packing-aligned

    grid = (pl.cdiv(M, tm), out_f // tn, in_f // tk)           # ragged M: masked tail

    # Fold alpha/r into B once; keep bias 2-D f32 for in-kernel broadcast.
    bsc = (lora_B * scaling).astype(jnp.float32)               # (out_f, r)
    b2 = bias.reshape(1, out_f).astype(jnp.float32)

    # --- cost / VMEM hints ---------------------------------------------------
    flops = int(2 * M * in_f * out_f + 2 * M * r * out_f)
    bytes_accessed = int(
        x2.size * op_isz + weight.size * op_isz + b2.size * 4
        + xa.size * 4 + bsc.size * 4
        + M * out_f * jnp.dtype(out_dtype).itemsize)
    cost = pl.CostEstimate(flops=flops, transcendentals=0,
                           bytes_accessed=bytes_accessed)

    r_lanes = max(128, ((r + 127) // 128) * 128)               # lane padding of rank dim
    vmem_need = (
        2 * tm * tk * op_isz               # x tiles (double-buffered)
        + 2 * tn * tk * op_isz             # W tiles
        + 2 * 8 * tn * 4                   # bias tiles (sublane-padded)
        + 2 * tm * r_lanes * 4             # xa tiles
        + 2 * tn * r_lanes * 4             # scaled-B tiles
        + 2 * tm * tn * jnp.dtype(out_dtype).itemsize  # output tiles
        + tm * tn * 4)                     # f32 accumulator scratch
    vmem_limit = int(min(max(32 * 1024 * 1024, 2 * vmem_need),
                         int(0.75 * vmem_cap)))

    stream_kw = ({} if buffer_depth is None
                 else dict(pipeline_mode=pl.Buffered(buffer_depth)))

    out2 = pl.pallas_call(
        _lora_linear_kernel,
        out_shape=jax.ShapeDtypeStruct((M, out_f), out_dtype),
        grid_spec=pltpu.PrefetchScalarGridSpec(
            num_scalar_prefetch=0,
            grid=grid,
            in_specs=[
                pl.BlockSpec((tm, tk), lambda i, j, k: (i, k), **stream_kw),  # x
                pl.BlockSpec((tn, tk), lambda i, j, k: (j, k), **stream_kw),  # W (out, in)
                pl.BlockSpec((1, tn), lambda i, j, k: (0, j)),                # bias
                pl.BlockSpec((tm, r), lambda i, j, k: (i, 0)),                # xa = x@A^T
                pl.BlockSpec((tn, r), lambda i, j, k: (j, 0)),                # scaling*B
            ],
            out_specs=pl.BlockSpec((tm, tn), lambda i, j, k: (i, j)),
            scratch_shapes=[
                pltpu.VMEM((tm, tn), jnp.float32),                            # pretrained acc
            ],
        ),
        compiler_params=pltpu.CompilerParams(
            dimension_semantics=("parallel", "parallel", "arbitrary"),
            vmem_limit_bytes=vmem_limit),
        cost_estimate=cost,
    )(x2, weight, b2, xa, bsc)

    return out2.reshape(*x.shape[:-1], out_f)


if __name__ == "__main__":
    # Small, deterministic setup consistent with
    # LoRALinear(in_features=32, out_features=32, r=4, lora_alpha=8).
    in_features, out_features = 32, 32
    r, lora_alpha = 4, 8
    batch, seq = 2, 8

    key = jax.random.PRNGKey(0)
    k_x, k_w, k_b, k_a, k_bB = jax.random.split(key, 5)

    x = jax.random.normal(k_x, (batch, seq, in_features), dtype=jnp.float32)

    # Deterministic parameter init (shapes as in the module __init__).
    w_bound = 1.0 / math.sqrt(in_features)
    weight = jax.random.uniform(k_w, (out_features, in_features),
                                minval=-w_bound, maxval=w_bound,
                                dtype=jnp.float32)
    bias = jax.random.uniform(k_b, (out_features,),
                              minval=-w_bound, maxval=w_bound,
                              dtype=jnp.float32)
    # lora_A: kaiming_uniform_(a=sqrt(5)) -> bound = 1/sqrt(in_features)
    lora_A = jax.random.uniform(k_a, (r, in_features),
                                minval=-w_bound, maxval=w_bound,
                                dtype=jnp.float32)
    # PyTorch inits lora_B to zeros; use small non-zero values here so the
    # LoRA branch is actually exercised (still deterministic).
    lora_B = 0.01 * jax.random.normal(k_bB, (out_features, r),
                                      dtype=jnp.float32)

    # Pure-JAX reference (lora_dropout = 0.0 -> identity).
    scaling = lora_alpha / r
    ref = (x @ weight.T + bias) + (x @ lora_A.T) @ lora_B.T * scaling

    # f32 path (bit-tight vs reference).
    out = lora_linear(x, weight, bias, lora_A, lora_B,
                      lora_alpha=lora_alpha, r=r)
    out = jax.block_until_ready(out)
    assert out.shape == (batch, seq, out_features)
    assert jnp.allclose(out, ref, atol=1e-5, rtol=1e-5), "mismatch vs reference (f32)"

    # bf16-operand path (v5e/v6e MXU feedback); f32 accumulation, looser tolerance.
    out_bf16 = lora_linear(x, weight, bias, lora_A, lora_B,
                           lora_alpha=lora_alpha, r=r,
                           operand_dtype=jnp.bfloat16)
    out_bf16 = jax.block_until_ready(out_bf16)
    assert jnp.allclose(out_bf16, ref, atol=5e-2, rtol=5e-2), \
        "mismatch vs reference (bf16 operands)"

    print("KERNEL_OK")
</pallas_src>

<mosaic_0001>
module attributes {stable_mosaic.version = 11 : i64} {
  func.func @_lora_linear_kernel(%arg0: i32, %arg1: i32, %arg2: i32, %arg3: memref<16x32xf32, #tpu.memory_space<vmem>>, %arg4: memref<32x32xf32, #tpu.memory_space<vmem>>, %arg5: memref<1x32xf32, #tpu.memory_space<vmem>>, %arg6: memref<16x4xf32, #tpu.memory_space<vmem>>, %arg7: memref<32x4xf32, #tpu.memory_space<vmem>>, %arg8: memref<16x32xf32, #tpu.memory_space<vmem>>, %arg9: memref<16x32xf32, #tpu.memory_space<vmem>>) attributes {dimension_semantics = [#tpu.dimension_semantics<parallel>, #tpu.dimension_semantics<parallel>, #tpu.dimension_semantics<arbitrary>], iteration_bounds = array<i64: 1, 1, 1>, scalar_prefetch = 0 : i64, scratch_operands = 1 : i64, tpu.core_type = #tpu.core_type<tc>, window_params = [{transform_indices = @transform_0, window_bounds = array<i64: 16, 32>}, {transform_indices = @transform_1, window_bounds = array<i64: 32, 32>}, {transform_indices = @transform_2, window_bounds = array<i64: 1, 32>}, {transform_indices = @transform_3, window_bounds = array<i64: 16, 4>}, {transform_indices = @transform_4, window_bounds = array<i64: 32, 4>}, {transform_indices = @transform_5, window_bounds = array<i64: 16, 32>}]} {
    %c0_i32 = arith.constant 0 : i32
    %0 = arith.cmpi eq, %arg2, %c0_i32 : i32
    %1 = arith.extui %0 : i1 to i32
    %c0_i32_0 = arith.constant 0 : i32
    %2 = arith.cmpi ne, %1, %c0_i32_0 : i32
    scf.if %2 {
      %c0_10 = arith.constant 0 : index
      %c0_11 = arith.constant 0 : index
      %12 = vector.load %arg5[%c0_10, %c0_11] : memref<1x32xf32, #tpu.memory_space<vmem>>, vector<1x32xf32>
      %13 = vector.shape_cast %12 : vector<1x32xf32> to vector<1x32xf32>
      %14 = vector.broadcast %13 : vector<1x32xf32> to vector<16x32xf32>
      %c0_12 = arith.constant 0 : index
      %c0_13 = arith.constant 0 : index
      %15 = vector.load %arg9[%c0_12, %c0_13] : memref<16x32xf32, #tpu.memory_space<vmem>>, vector<16x32xf32>
      tpu.vector_store %arg9[%c0_12, %c0_13], %14 {strides = array<i32>} : memref<16x32xf32, #tpu.memory_space<vmem>>, vector<16x32xf32>,
    } else {
    }
    %c0 = arith.constant 0 : index
    %c0_1 = arith.constant 0 : index
    %3 = vector.load %arg9[%c0, %c0_1] : memref<16x32xf32, #tpu.memory_space<vmem>>, vector<16x32xf32>
    %c0_2 = arith.constant 0 : index
    %c0_3 = arith.constant 0 : index
    %4 = vector.load %arg3[%c0_2, %c0_3] : memref<16x32xf32, #tpu.memory_space<vmem>>, vector<16x32xf32>
    %c0_4 = arith.constant 0 : index
    %c0_5 = arith.constant 0 : index
    %5 = vector.load %arg4[%c0_4, %c0_5] : memref<32x32xf32, #tpu.memory_space<vmem>>, vector<32x32xf32>
    %cst = arith.constant dense<0.000000e+00> : vector<16x32xf32>
    %6 = tpu.matmul %4, %5, %cst {dimension_numbers = #tpu.dot_dimension_numbers<[1], [1], [0], [0], [0, 0, 1, 0], [], []>} : vector<16x32xf32>, vector<32x32xf32>, vector<16x32xf32> -> vector<16x32xf32>
    %7 = arith.addf %3, %6 : vector<16x32xf32>
    %c0_6 = arith.constant 0 : index
    %c0_7 = arith.constant 0 : index
    %8 = vector.load %arg9[%c0_6, %c0_7] : memref<16x32xf32, #tpu.memory_space<vmem>>, vector<16x32xf32>
    tpu.vector_store %arg9[%c0_6, %c0_7], %7 {strides = array<i32>} : memref<16x32xf32, #tpu.memory_space<vmem>>, vector<16x32xf32>,
    %c0_i32_8 = arith.constant 0 : i32
    %9 = arith.cmpi eq, %arg2, %c0_i32_8 : i32
    %10 = arith.extui %9 : i1 to i32
    %c0_i32_9 = arith.constant 0 : i32
    %11 = arith.cmpi ne, %10, %c0_i32_9 : i32
    scf.if %11 {
      %c0_10 = arith.constant 0 : index
      %c0_11 = arith.constant 0 : index
      %12 = vector.load %arg6[%c0_10, %c0_11] : memref<16x4xf32, #tpu.memory_space<vmem>>, vector<16x4xf32>
      %c0_12 = arith.constant 0 : index
      %c0_13 = arith.constant 0 : index
      %13 = vector.load %arg7[%c0_12, %c0_13] : memref<32x4xf32, #tpu.memory_space<vmem>>, vector<32x4xf32>
      %cst_14 = arith.constant dense<0.000000e+00> : vector<16x32xf32>
      %14 = tpu.matmul %12, %13, %cst_14 {dimension_numbers = #tpu.dot_dimension_numbers<[1], [1], [0], [0], [0, 0, 1, 0], [], []>} : vector<16x4xf32>, vector<32x4xf32>, vector<16x32xf32> -> vector<16x32xf32>
      %c0_15 = arith.constant 0 : index
      %c0_16 = arith.constant 0 : index
      %15 = vector.load %arg9[%c0_15, %c0_16] : memref<16x32xf32, #tpu.memory_space<vmem>>, vector<16x32xf32>
      %16 = arith.addf %15, %14 : vector<16x32xf32>
      %c0_17 = arith.constant 0 : index
      %c0_18 = arith.constant 0 : index
      %17 = vector.load %arg8[%c0_17, %c0_18] : memref<16x32xf32, #tpu.memory_space<vmem>>, vector<16x32xf32>
      tpu.vector_store %arg8[%c0_17, %c0_18], %16 {strides = array<i32>} : memref<16x32xf32, #tpu.memory_space<vmem>>, vector<16x32xf32>,
    } else {
    }
    return
  }
  func.func @transform_0(%arg0: i32, %arg1: i32, %arg2: i32) -> (i32, i32) {
    %c0_i32 = arith.constant 0 : i32
    return %arg0, %arg2 : i32, i32
  }
  func.func @transform_1(%arg0: i32, %arg1: i32, %arg2: i32) -> (i32, i32) {
    %c0_i32 = arith.constant 0 : i32
    return %arg1, %arg2 : i32, i32
  }
  func.func @transform_2(%arg0: i32, %arg1: i32, %arg2: i32) -> (i32, i32) {
    %c0_i32 = arith.constant 0 : i32
    %c0_i32_0 = arith.constant 0 : i32
    return %c0_i32, %arg1 : i32, i32
  }
  func.func @transform_3(%arg0: i32, %arg1: i32, %arg2: i32) -> (i32, i32) {
    %c0_i32 = arith.constant 0 : i32
    %c0_i32_0 = arith.constant 0 : i32
    return %arg0, %c0_i32 : i32, i32
  }
  func.func @transform_4(%arg0: i32, %arg1: i32, %arg2: i32) -> (i32, i32) {
    %c0_i32 = arith.constant 0 : i32
    %c0_i32_0 = arith.constant 0 : i32
    return %arg1, %c0_i32 : i32, i32
  }
  func.func @transform_5(%arg0: i32, %arg1: i32, %arg2: i32) -> (i32, i32) {
    %c0_i32 = arith.constant 0 : i32
    return %arg0, %arg1 : i32, i32
  }
}

</mosaic_0001>

<llo_original>
// kernel: tpu_custom_call.1
$region0: #{tpu_custom_call.1}
  #allocation0 [shape = 'u32[]', space=smem, size = 0x4, offset = 0x4, fixed_abs, tag = 'smem constant byte address 0x4 - core index']
  #allocation1 [shape = 'u32[144,128]{1,0:T(1,128)}', space=vmem, size = 0x12000, scoped, tag = 'internal scratch']
  #allocation2 [shape = 'f32[16,32]{1,0:T(8,128)}', space=vmem, size = 0x2000, scoped, tag = 'scratch operand']
  %s0 = inlined_call_operand.vmem [shape: f32[16,32], index: 0, kind: input, shape index: {}]
  %s1 = inlined_call_operand.vmem [shape: f32[32,32], index: 1, kind: input, shape index: {}]
  %s2 = inlined_call_operand.vmem [shape: f32[1,32], index: 2, kind: input, shape index: {}]
  %s3 = inlined_call_operand.vmem [shape: f32[16,4], index: 3, kind: input, shape index: {}]
  %s4 = inlined_call_operand.vmem [shape: f32[32,4], index: 4, kind: input, shape index: {}]
  %s5 = inlined_call_operand.hbm [shape: f32[16,32], index: 5, kind: output, shape index: {}]
  %s6 = sld [smem:[#allocation0]]
  $region38: #{tpu_custom_call.1} parent=0
    _
  %s8 = ssub.s32 1, %s6
  %s9 = scalar_select 0, %s8, %s6
  $region1: #{tpu_custom_call.1} parent=0
    #allocation3 [shape = 'u8[8192]{0}', space=vmem, size = 0x2000, scoped, tag = 'output window, operand 0, single buffered']
    #allocation4 [shape = 's32[1]{0}', space=sflag, size = 0x4, scoped, tag = 'scoped memory for tpu_custom_call.1']
    %10 = vsyncpa [#allocation4], 0
    // Predicated region
    $region2: #{tpu_custom_call.1} parent=1 // pred_check
      _
    $region3: #{tpu_custom_call.1} parent=1 // pred_check_branch
      %12 = sbr.rel (0) target = $region5
    $region4: #{tpu_custom_call.1} parent=1 // pred_region
      _
    $region5: #{tpu_custom_call.1} parent=1 // pred_fallthru
      _
    // Predicated region
    $region6: #{tpu_custom_call.1} parent=1 // pred_check
      _
    $region7: #{tpu_custom_call.1} parent=1 // pred_check_branch
      %14 = sbr.rel (0) target = $region9
    $region8: #{tpu_custom_call.1} parent=1 // pred_region
      _
    $region9: #{tpu_custom_call.1} parent=1 // pred_fallthru
      _
    // Predicated region
    $region10: #{tpu_custom_call.1} parent=1 // pred_check
      _
    $region11: #{tpu_custom_call.1} parent=1 // pred_check_branch
      %16 = sbr.rel (0) target = $region13
    $region12: #{tpu_custom_call.1} parent=1 // pred_region
      _
    $region13: #{tpu_custom_call.1} parent=1 // pred_fallthru
      _
    // Predicated region
    $region14: #{tpu_custom_call.1} parent=1 // pred_check
      _
    $region15: #{tpu_custom_call.1} parent=1 // pred_check_branch
      %18 = sbr.rel (0) target = $region17
    $region16: #{tpu_custom_call.1} parent=1 // pred_region
      _
    $region17: #{tpu_custom_call.1} parent=1 // pred_fallthru
      _
    // Predicated region
    $region18: #{tpu_custom_call.1} parent=1 // pred_check
      _
    $region19: #{tpu_custom_call.1} parent=1 // pred_check_branch
      %20 = sbr.rel (0) target = $region21
    $region20: #{tpu_custom_call.1} parent=1 // pred_region
      _
    $region21: #{tpu_custom_call.1} parent=1 // pred_fallthru
      _
    %p21 = scmp.eq.s32.totalorder 0, 0
    // Predicated region
    $region22: #{tpu_custom_call.1} parent=1 // pred_check
      %p22 = pneg %p21
    $region23: #{tpu_custom_call.1} parent=1 // pred_check_branch
      %24 = sbr.rel (%p22) target = $region25
    $region24: #{tpu_custom_call.1} parent=1 // pred_region
      %v25 = vld [vmem:[%s2] sm:$0x1]
      %v27 = vlaneseq
      %v28 = vshrl.u32 %v27, 7
      %v29 = vsub.s32 0, %v28
      %v30 = vrot.slane %v25, %v29
      %vm32 = vcmask 261120
      %33 = vst.msk [vmem:[#allocation2] sm:$0xff] %vm32, %v30
      %34 = vst.msk [vmem:[#allocation2 + $0x8] sm:$0xff] %vm32, %v30
    $region25: #{tpu_custom_call.1} parent=1 // pred_fallthru
      _
    %v35 = vld [vmem:[#allocation2] sm:$0xff]
    %v36 = vld [vmem:[#allocation2 + $0x8] sm:$0xff]
    %v37 = vld [vmem:[%s0] sm:$0xff]
    %v38 = vld [vmem:[%s0 + $0x8] sm:$0xff]
    %v39 = vld [vmem:[%s1] sm:$0xff]
    %v40 = vld [vmem:[%s1 + $0x8] sm:$0xff]
    %v41 = vld [vmem:[%s1 + $0x10] sm:$0xff]
    %v42 = vld [vmem:[%s1 + $0x18] sm:$0xff]
    %vm43 = vcmask 261120
    %v45 = vsel %vm43, %v37, 0
    %v48 = vsel %vm43, %v38, 0
    %v51 = vsel %vm43, %v39, 0
    %v54 = vsel %vm43, %v40, 0
    %v57 = vsel %vm43, %v41, 0
    %v60 = vsel %vm43, %v42, 0
    %62 = vmatprep.subr.mxu0 0.0
    %63 = vmatpush1.xpose.msra.mxu0 %v51
    %64 = vmatprep.subr.mxu0 0.0
    %65 = vmatpush1.xpose.msra.mxu0 %v54
    %66 = vmatprep.subr.mxu0 0.0
    %67 = vmatpush1.xpose.msra.mxu0 %v57
    %68 = vmatprep.subr.mxu0 0.0
    %69 = vmatpush1.xpose.msra.mxu0 %v60
    %70 = vmatprep.subr.mxu0 0.0
    %71 = vmatpush1.xpose.msra.mxu0 0.0
    %72 = vmatprep.subr.mxu0 0.0
    %73 = vmatpush1.xpose.msra.mxu0 0.0
    %74 = vmatprep.subr.mxu0 0.0
    %75 = vmatpush1.xpose.msra.mxu0 0.0
    %76 = vmatprep.subr.mxu0 0.0
    %77 = vmatpush1.xpose.msra.mxu0 0.0
    %78 = vmatprep.subr.mxu0 0.0
    %79 = vmatpush1.xpose.msra.mxu0 0.0
    %80 = vmatprep.subr.mxu0 0.0
    %81 = vmatpush1.xpose.msra.mxu0 0.0
    %82 = vmatprep.subr.mxu0 0.0
    %83 = vmatpush1.xpose.msra.mxu0 0.0
    %84 = vmatprep.subr.mxu0 0.0
    %85 = vmatpush1.xpose.msra.mxu0 0.0
    %86 = vmatprep.subr.mxu0 0.0
    %87 = vmatpush1.xpose.msra.mxu0 0.0
    %88 = vmatprep.subr.mxu0 0.0
    %89 = vmatpush1.xpose.msra.mxu0 0.0
    %90 = vmatprep.subr.mxu0 0.0
    %91 = vmatpush1.xpose.msra.mxu0 0.0
    %92 = vmatprep.subr.mxu0 0.0
    %93 = vmatpush1.xpose.msra.mxu0 0.0
    %94 = vmatprep.subr.mxu0 0.0
    %95 = vmatpush1.xpose.msra.mxu0 0.0
    %96 = vmatprep.subr.mxu0 0.0
    %97 = vmatpush1.xpose.msra.mxu0 0.0
    %98 = vmatprep.subr.mxu0 0.0
    %99 = vmatpush1.xpose.msra.mxu0 0.0
    %100 = vmatprep.subr.mxu0 0.0
    %101 = vmatpush1.xpose.msra.mxu0 0.0
    %102 = vmatprep.subr.mxu0 0.0
    %103 = vmatpush1.xpose.msra.mxu0 0.0
    %104 = vmatprep.subr.mxu0 0.0
    %105 = vmatpush1.xpose.msra.mxu0 0.0
    %106 = vmatprep.subr.mxu0 0.0
    %107 = vmatpush1.xpose.msra.mxu0 0.0
    %108 = vmatprep.subr.mxu0 0.0
    %109 = vmatpush1.xpose.msra.mxu0 0.0
    %110 = vmatprep.subr.mxu0 0.0
    %111 = vmatpush1.xpose.msra.mxu0 0.0
    %112 = vmatprep.subr.mxu0 0.0
    %113 = vmatpush1.xpose.msra.mxu0 0.0
    %114 = vmatprep.subr.mxu0 0.0
    %115 = vmatpush1.xpose.msra.mxu0 0.0
    %116 = vmatprep.subr.mxu0 0.0
    %117 = vmatpush1.xpose.msra.mxu0 0.0
    %118 = vmatprep.subr.mxu0 0.0
    %119 = vmatpush1.xpose.msra.mxu0 0.0
    %120 = vmatprep.subr.mxu0 0.0
    %121 = vmatpush1.xpose.msra.mxu0 0.0
    %122 = vmatprep.subr.mxu0 0.0
    %123 = vmatpush1.xpose.msra.mxu0 0.0
    %124 = vmatprep.subr.mxu0 0.0
    %125 = vmatpush1.xpose.msra.mxu0 0.0
    %126 = vmatprep.mubr.f32.mxu0 0.0
    %127 = vmatmul.mubr.f32.gmra.mrb[0].mxu0 %v45
    %v128 = vpop.f32.mrb[0].mxu0
    %v129 = vadd.f32 0.0, %v128
    %v130 = vpop.f32.mrb[0].mxu0
    %131 = vmatprep.mubr.f32.mxu0 0.0
    %132 = vmatmul.mubr.f32.gmra.mrb[0].mxu0 %v48
    %v133 = vpop.f32.mrb[0].mxu0
    %v134 = vadd.f32 0.0, %v133
    %v135 = vpop.f32.mrb[0].mxu0
    %136 = vdwg.mxu0
    %v137 = vadd.f32 %v35, %v129
    %v138 = vadd.f32 %v36, %v134
    %139 = vst.msk [vmem:[#allocation2] sm:$0xff] %vm43, %v137
    %140 = vst.msk [vmem:[#allocation2 + $0x8] sm:$0xff] %vm43, %v138
    // Predicated region
    $region26: #{tpu_custom_call.1} parent=1 // pred_check
      %p141 = pneg %p21
    $region27: #{tpu_custom_call.1} parent=1 // pred_check_branch
      %143 = sbr.rel (%p141) target = $region29
    $region28: #{tpu_custom_call.1} parent=1 // pred_region
      %v144 = vld [vmem:[%s3] sm:$0xff]
      %v145 = vld [vmem:[%s3 + $0x8] sm:$0xff]
      %v146 = vld [vmem:[%s4] sm:$0xff]
      %v147 = vld [vmem:[%s4 + $0x8] sm:$0xff]
      %v148 = vld [vmem:[%s4 + $0x10] sm:$0xff]
      %v149 = vld [vmem:[%s4 + $0x18] sm:$0xff]
      %vm150 = vcmask 31744
      %v152 = vsel %vm150, %v144, 0
      %v155 = vsel %vm150, %v145, 0
      %v158 = vsel %vm150, %v146, 0
      %v161 = vsel %vm150, %v147, 0
      %v164 = vsel %vm150, %v148, 0
      %v167 = vsel %vm150, %v149, 0
      %169 = vmatprep.subr.mxu0 0.0
      %170 = vmatpush1.xpose.msra.mxu0 %v158
      %171 = vmatprep.subr.mxu0 0.0
      %172 = vmatpush1.xpose.msra.mxu0 %v161
      %173 = vmatprep.subr.mxu0 0.0
      %174 = vmatpush1.xpose.msra.mxu0 %v164
      %175 = vmatprep.subr.mxu0 0.0
      %176 = vmatpush1.xpose.msra.mxu0 %v167
      %177 = vmatprep.subr.mxu0 0.0
      %178 = vmatpush1.xpose.msra.mxu0 0.0
      %179 = vmatprep.subr.mxu0 0.0
      %180 = vmatpush1.xpose.msra.mxu0 0.0
      %181 = vmatprep.subr.mxu0 0.0
      %182 = vmatpush1.xpose.msra.mxu0 0.0
      %183 = vmatprep.subr.mxu0 0.0
      %184 = vmatpush1.xpose.msra.mxu0 0.0
      %185 = vmatprep.subr.mxu0 0.0
      %186 = vmatpush1.xpose.msra.mxu0 0.0
      %187 = vmatprep.subr.mxu0 0.0
      %188 = vmatpush1.xpose.msra.mxu0 0.0
      %189 = vmatprep.subr.mxu0 0.0
      %190 = vmatpush1.xpose.msra.mxu0 0.0
      %191 = vmatprep.subr.mxu0 0.0
      %192 = vmatpush1.xpose.msra.mxu0 0.0
      %193 = vmatprep.subr.mxu0 0.0
      %194 = vmatpush1.xpose.msra.mxu0 0.0
      %195 = vmatprep.subr.mxu0 0.0
      %196 = vmatpush1.xpose.msra.mxu0 0.0
      %197 = vmatprep.subr.mxu0 0.0
      %198 = vmatpush1.xpose.msra.mxu0 0.0
      %199 = vmatprep.subr.mxu0 0.0
      %200 = vmatpush1.xpose.msra.mxu0 0.0
      %201 = vmatprep.subr.mxu0 0.0
      %202 = vmatpush1.xpose.msra.mxu0 0.0
      %203 = vmatprep.subr.mxu0 0.0
      %204 = vmatpush1.xpose.msra.mxu0 0.0
      %205 = vmatprep.subr.mxu0 0.0
      %206 = vmatpush1.xpose.msra.mxu0 0.0
      %207 = vmatprep.subr.mxu0 0.0
      %208 = vmatpush1.xpose.msra.mxu0 0.0
      %209 = vmatprep.subr.mxu0 0.0
      %210 = vmatpush1.xpose.msra.mxu0 0.0
      %211 = vmatprep.subr.mxu0 0.0
      %212 = vmatpush1.xpose.msra.mxu0 0.0
      %213 = vmatprep.subr.mxu0 0.0
      %214 = vmatpush1.xpose.msra.mxu0 0.0
      %215 = vmatprep.subr.mxu0 0.0
      %216 = vmatpush1.xpose.msra.mxu0 0.0
      %217 = vmatprep.subr.mxu0 0.0
      %218 = vmatpush1.xpose.msra.mxu0 0.0
      %219 = vmatprep.subr.mxu0 0.0
      %220 = vmatpush1.xpose.msra.mxu0 0.0
      %221 = vmatprep.subr.mxu0 0.0
      %222 = vmatpush1.xpose.msra.mxu0 0.0
      %223 = vmatprep.subr.mxu0 0.0
      %224 = vmatpush1.xpose.msra.mxu0 0.0
      %225 = vmatprep.subr.mxu0 0.0
      %226 = vmatpush1.xpose.msra.mxu0 0.0
      %227 = vmatprep.subr.mxu0 0.0
      %228 = vmatpush1.xpose.msra.mxu0 0.0
      %229 = vmatprep.subr.mxu0 0.0
      %230 = vmatpush1.xpose.msra.mxu0 0.0
      %231 = vmatprep.subr.mxu0 0.0
      %232 = vmatpush1.xpose.msra.mxu0 0.0
      %233 = vmatprep.mubr.f32.mxu0 0.0
      %234 = vmatmul.mubr.f32.gmra.mrb[0].mxu0 %v152
      %v235 = vpop.f32.mrb[0].mxu0
      %v236 = vadd.f32 0.0, %v235
      %v237 = vpop.f32.mrb[0].mxu0
      %238 = vmatprep.mubr.f32.mxu0 0.0
      %239 = vmatmul.mubr.f32.gmra.mrb[0].mxu0 %v155
      %v240 = vpop.f32.mrb[0].mxu0
      %v241 = vadd.f32 0.0, %v240
      %v242 = vpop.f32.mrb[0].mxu0
      %243 = vdwg.mxu0
      %v244 = vld [vmem:[#allocation2] sm:$0xff]
      %v245 = vld [vmem:[#allocation2 + $0x8] sm:$0xff]
      %v246 = vadd.f32 %v244, %v236
      %v247 = vadd.f32 %v245, %v241
      %248 = vst.msk [vmem:[#allocation3] sm:$0xff] %vm43, %v246
      %249 = vst.msk [vmem:[#allocation3 + $0x8] sm:$0xff] %vm43, %v247
    $region29: #{tpu_custom_call.1} parent=1 // pred_fallthru
      _
    // Predicated region
    $region30: #{tpu_custom_call.1} parent=1 // pred_check
      _
    $region31: #{tpu_custom_call.1} parent=1 // pred_check_branch
      %251 = sbr.rel (0) target = $region33
    $region32: #{tpu_custom_call.1} parent=1 // pred_region
      %s253 = ssub.s32 256, 256
      %254 = vsyncadd [#allocation4], %s253
      %s255 = sshll.u32 [#allocation3], 4
      %s256 = int_to_ptr.vmem [resolvable:$true] %s255
      %261 = dma.vmem_to_hbm [thread:$0]  %s256, 256, %s5, [#allocation4], 128, 128, 8
    $region33: #{tpu_custom_call.1} parent=1 // pred_fallthru
      _
    // Predicated region
    $region34: #{tpu_custom_call.1} parent=1 // pred_check
      _
    $region35: #{tpu_custom_call.1} parent=1 // pred_check_branch
      %263 = sbr.rel (0) target = $region37
    $region36: #{tpu_custom_call.1} parent=1 // pred_region
      %264 = dma.done [#allocation4], 256
    $region37: #{tpu_custom_call.1} parent=1 // pred_fallthru
      _
    %265 = vsyncpa [#allocation4], 1

</llo_original>
